<compile_context>
chip_gen: v7x
topology: tpu7x:2x2x1
jax: 0.10.0
libtpu: 0.0.40
codegen_flags: <defaults>
</compile_context>

<pallas_src>
import functools

import jax
import jax.numpy as jnp
from jax import lax
from jax.experimental import pallas as pl
from jax.experimental.pallas import tpu as pltpu

BN_EPS = 1e-5  # PyTorch BatchNorm1d default


# ----------------------------------------------------------------------------
# Pallas kernel: one-hot embedding gather -> (Linear -> ReLU)^L -> head
#                -> sigmoid -> range-scale   (BN pre-folded into W/b)
# ----------------------------------------------------------------------------
def _make_fused_kernel(num_fc_layers, num_users, out_lo, out_hi):
    def kernel(*refs):
        # refs: u_idx (TB,1) i32, i_idx (TB,1) i32, table (NU+NI, 2*emb),
        #       (w, b) * num_fc_layers, head_w (1, nh) f32, head_b (1,1) f32 [SMEM],
        #       out (TB, 1) f32
        u_ref, i_ref, tbl_ref = refs[0], refs[1], refs[2]
        o_ref = refs[-1]
        prm = refs[3:-1]

        tb = u_ref.shape[0]
        n_rows = tbl_ref.shape[0]

        # --- fused embedding gather + concat ---------------------------------
        # One-hot over the combined [user | item] row space contracted against the
        # block-diagonal table on the MXU -> x = [user_emb | item_emb] directly.
        # (Padded rows of the last tile carry garbage indices; everything downstream
        #  is bounded (ReLU/sigmoid) and the OOB output rows are dropped by Pallas.)
        uids = u_ref[...]                                       # (TB, 1) int32
        iids = i_ref[...] + num_users                           # (TB, 1) int32
        col = lax.broadcasted_iota(jnp.int32, (tb, n_rows), 1)  # (TB, NU+NI)
        onehot = jnp.logical_or(col == uids, col == iids).astype(tbl_ref.dtype)
        h = jnp.dot(onehot, tbl_ref[...],
                    preferred_element_type=jnp.float32)         # (TB, 2*emb) f32

        # --- (Linear -> ReLU)^L with eval-mode BN folded into W/b ------------
        for li in range(num_fc_layers):
            w = prm[2 * li][...]                                # (ni, nf) matmul dtype
            b = prm[2 * li + 1][...]                            # (1, nf)  float32
            h = jnp.dot(h.astype(w.dtype), w, preferred_element_type=jnp.float32)
            h = jnp.maximum(h + b, 0.0)

        # --- head: VPU broadcast-multiply + XLU lane reduction (no M=1 matmul)
        wh = prm[2 * num_fc_layers][...]                        # (1, nh) float32
        bh = prm[2 * num_fc_layers + 1][0, 0]                   # scalar from SMEM
        logit = jnp.sum(h * wh, axis=-1, keepdims=True) + bh    # (TB, 1)
        y = jax.nn.sigmoid(logit)
        o_ref[...] = (y * (out_hi - out_lo) + out_lo).astype(o_ref.dtype)

    return kernel


# ----------------------------------------------------------------------------
# Parameter prep: pack embeddings into a block-diagonal table and fold
# eval-mode BatchNorm into the following Linear / the head.
# ----------------------------------------------------------------------------
def prepare_inference_params(params, config, matmul_dtype=jnp.bfloat16):
    """BN(h) @ W_next = h @ (scale[:,None] * W_next) + shift @ W_next, with
    scale = gamma * rsqrt(running_var + eps), shift = beta - running_mean * scale.

    NOTE: this fold is only valid because the reference block order is
    Linear -> ReLU -> BN (BN is applied AFTER ReLU and feeds the next Linear).
    A Linear -> BN -> ReLU variant must NOT reuse this prep.

    Matmul operands (embedding table, fc weights) are cast to `matmul_dtype`
    (default bf16: half the DMA bytes, f32 MXU accumulation). Biases and the
    head weights stay float32 (the head runs on the VPU/XLU)."""
    emb = config['emb_size']
    fc_sizes = config['fc_layer_sizes']
    num_fc = len(fc_sizes) - 1
    assert fc_sizes[0] == 2 * emb, "fc_layer_sizes[0] must equal 2 * emb_size"

    nu, ni = config['num_users'], config['num_items']
    table = jnp.zeros((nu + ni, 2 * emb), jnp.float32)
    table = table.at[:nu, :emb].set(params['emb_user'].astype(jnp.float32))
    table = table.at[nu:, emb:].set(params['emb_item'].astype(jnp.float32))

    ws, bs = [], []
    scale = shift = None  # pending BN scale/shift from the previous block
    for li in range(num_fc):
        lp = params['fc'][li]
        w = lp['w'].astype(jnp.float32)                          # (ni, nf)
        b = lp['b'].astype(jnp.float32)                          # (1, nf)
        if scale is not None:
            b = shift @ w + b
            w = scale.reshape(-1, 1) * w
        ws.append(w.astype(matmul_dtype))
        bs.append(b)
        scale = lp['gamma'] * lax.rsqrt(lp['running_var'] + BN_EPS)   # (1, nf)
        shift = lp['beta'] - lp['running_mean'] * scale               # (1, nf)

    wh = params['head']['w'].astype(jnp.float32)                 # (nh, 1)
    bh = params['head']['b'].astype(jnp.float32)                 # (1, 1)
    if scale is not None:
        bh = shift @ wh + bh
        wh = scale.reshape(-1, 1) * wh

    return {
        'emb_table': table.astype(matmul_dtype),                 # (NU+NI, 2*emb)
        'fc_w': ws,
        'fc_b': bs,
        'head_w': wh.T,                                          # (1, nh) float32
        'head_b': bh,                                            # (1, 1) float32 (SMEM)
    }


# ----------------------------------------------------------------------------
# Forward
# ----------------------------------------------------------------------------
def _round_up(x, m):
    return ((x + m - 1) // m) * m


def _pick_batch_tile(batch, max_tile=2048):
    # Per-grid-step cost (~0.35 us) dominates at these layer widths, so use big tiles,
    # but keep >= 2 steps for batches > 256 rows so both TensorCores are used on v7x.
    if batch <= 256:
        return batch
    return min(max_tile, _round_up(pl.cdiv(batch, 2), 256))


def concat_net_forward(user_idx, item_idx, prep, config):
    out_lo, out_hi = config['out_range']
    num_fc = len(config['fc_layer_sizes']) - 1
    num_users = config['num_users']

    B = user_idx.shape[0]
    u2 = user_idx.reshape(B, 1).astype(jnp.int32)
    i2 = item_idx.reshape(B, 1).astype(jnp.int32)

    TB = _pick_batch_tile(B)
    grid = (pl.cdiv(B, TB),)

    def resident(shape):
        # Constant index_map -> block never changes -> stays VMEM-resident across steps.
        return pl.BlockSpec(shape, lambda i: (0, 0))

    operands = [u2, i2, prep['emb_table']]
    in_specs = [
        pl.BlockSpec((TB, 1), lambda i: (i, 0)),
        pl.BlockSpec((TB, 1), lambda i: (i, 0)),
        resident(prep['emb_table'].shape),
    ]
    for li in range(num_fc):
        w, b = prep['fc_w'][li], prep['fc_b'][li]
        operands += [w, b]
        in_specs += [resident(w.shape), resident(b.shape)]
    operands += [prep['head_w'], prep['head_b']]
    in_specs += [resident(prep['head_w'].shape),
                 pl.BlockSpec(memory_space=pltpu.MemorySpace.SMEM)]   # (1,1) scalar

    kernel = _make_fused_kernel(num_fc, num_users, float(out_lo), float(out_hi))

    out = pl.pallas_call(
        kernel,
        out_shape=jax.ShapeDtypeStruct((B, 1), jnp.float32),
        grid=grid,
        in_specs=in_specs,
        out_specs=pl.BlockSpec((TB, 1), lambda i: (i, 0)),
        compiler_params=pltpu.CompilerParams(
            dimension_semantics=("parallel",),
            vmem_limit_bytes=32 * 1024 * 1024),
    )(*operands)
    return out                                                   # (B, 1), no reshape


# ----------------------------------------------------------------------------
# Deterministic parameter initialization (synthetic, no checkpoint)
# ----------------------------------------------------------------------------
def init_params(config, key):
    emb = config['emb_size']
    fc_sizes = config['fc_layer_sizes']

    keys = jax.random.split(key, 16)
    ki = iter(range(16))

    params = {}
    params['emb_user'] = (0.1 * jax.random.normal(
        keys[next(ki)], (config['num_users'], emb))).astype(jnp.float32)
    params['emb_item'] = (0.1 * jax.random.normal(
        keys[next(ki)], (config['num_items'], emb))).astype(jnp.float32)

    fc = []
    for ni, nf in zip(fc_sizes[:-1], fc_sizes[1:]):
        w = (jax.random.normal(keys[next(ki)], (ni, nf)) / jnp.sqrt(ni)
             ).astype(jnp.float32)
        b = (0.01 * jax.random.normal(keys[next(ki)], (1, nf))).astype(jnp.float32)
        fc.append(dict(
            w=w, b=b,
            gamma=jnp.ones((1, nf), jnp.float32) * 1.1,
            beta=jnp.full((1, nf), 0.05, jnp.float32),
            running_mean=jnp.full((1, nf), 0.02, jnp.float32),
            running_var=jnp.full((1, nf), 0.9, jnp.float32)))
    params['fc'] = fc

    nh = fc_sizes[-1]
    params['head'] = dict(
        w=(jax.random.normal(keys[next(ki)], (nh, 1)) / jnp.sqrt(nh)
           ).astype(jnp.float32),
        b=(0.01 * jax.random.normal(keys[next(ki)], (1, 1))).astype(jnp.float32),
    )
    return params


# ----------------------------------------------------------------------------
# Pure-JAX reference (un-folded BN, explicit gather/concat) for the sanity check
# ----------------------------------------------------------------------------
def reference_forward(user_idx, item_idx, params, config):
    out_lo, out_hi = config['out_range']
    user_emb = jnp.take(params['emb_user'], user_idx, axis=0)
    item_emb = jnp.take(params['emb_item'], item_idx, axis=0)
    h = jnp.concatenate([user_emb, item_emb], axis=1).astype(jnp.float32)
    for lp in params['fc']:
        h = h @ lp['w'] + lp['b']
        h = jnp.maximum(h, 0.0)
        h = (h - lp['running_mean']) * lax.rsqrt(lp['running_var'] + BN_EPS) \
            * lp['gamma'] + lp['beta']
    logit = h @ params['head']['w'] + params['head']['b']
    y = jax.nn.sigmoid(logit)
    return y * (out_hi - out_lo) + out_lo


# ----------------------------------------------------------------------------
if __name__ == "__main__":
    config = {
        'num_users': 100,
        'num_items': 200,
        'emb_size': 16,
        'emb_droupout': 0.1,              # identity at inference
        'fc_layer_sizes': [32, 64, 32],   # first must equal 2*emb_size
        'dropout': [0.1, 0.1],            # identity at inference
        'out_range': (1.0, 5.0),
    }

    key = jax.random.PRNGKey(0)
    pkey, ukey, ikey = jax.random.split(key, 3)
    params = init_params(config, pkey)

    B = 8
    user_idx = jax.random.randint(ukey, (B,), 0, config['num_users'], dtype=jnp.int32)
    item_idx = jax.random.randint(ikey, (B,), 0, config['num_items'], dtype=jnp.int32)

    fwd = jax.jit(functools.partial(concat_net_forward, config=config))

    # f32 matmul operands: bit-tight parity check against the f32 reference.
    prep_f32 = prepare_inference_params(params, config, matmul_dtype=jnp.float32)
    out_f32 = jax.block_until_ready(fwd(user_idx, item_idx, prep_f32))

    # bf16 matmul operands (the recommended default on v5e/v6e/v7x): halves the
    # weight/table DMA bytes; accumulation and all elementwise math stay f32.
    prep_bf16 = prepare_inference_params(params, config)
    out_bf16 = jax.block_until_ready(fwd(user_idx, item_idx, prep_bf16))

    ref = reference_forward(user_idx, item_idx, params, config)
    assert out_f32.shape == (B, 1), out_f32.shape
    assert out_bf16.shape == (B, 1), out_bf16.shape
    assert jnp.allclose(out_f32, ref, atol=1e-4, rtol=1e-4), (out_f32, ref)
    # bf16 matmul operands -> looser tolerance against the f32 reference.
    assert jnp.allclose(out_bf16, ref, atol=5e-2, rtol=5e-2), (out_bf16, ref)
    assert bool(jnp.all(out_f32 >= config['out_range'][0] - 1e-4))
    assert bool(jnp.all(out_f32 <= config['out_range'][1] + 1e-4))

    print("KERNEL_OK")
</pallas_src>

<mosaic_0001>
module attributes {stable_mosaic.version = 11 : i64} {
  func.func @kernel(%arg0: i32, %arg1: memref<8x1xi32, #tpu.memory_space<vmem>>, %arg2: memref<8x1xi32, #tpu.memory_space<vmem>>, %arg3: memref<300x32xf32, #tpu.memory_space<vmem>>, %arg4: memref<32x64xf32, #tpu.memory_space<vmem>>, %arg5: memref<1x64xf32, #tpu.memory_space<vmem>>, %arg6: memref<64x32xf32, #tpu.memory_space<vmem>>, %arg7: memref<1x32xf32, #tpu.memory_space<vmem>>, %arg8: memref<1x32xf32, #tpu.memory_space<vmem>>, %arg9: memref<1x1xf32, #tpu.memory_space<smem>>, %arg10: memref<8x1xf32, #tpu.memory_space<vmem>>) attributes {dimension_semantics = [#tpu.dimension_semantics<parallel>], iteration_bounds = array<i64: 1>, scalar_prefetch = 0 : i64, scratch_operands = 0 : i64, tpu.core_type = #tpu.core_type<tc>, window_params = [{transform_indices = @transform_0, window_bounds = array<i64: 8, 1>}, {transform_indices = @transform_1, window_bounds = array<i64: 8, 1>}, {pipeline_mode = #tpu.pipeline_mode<synchronous>, transform_indices = @transform_2, window_bounds = array<i64: 300, 32>}, {pipeline_mode = #tpu.pipeline_mode<synchronous>, transform_indices = @transform_3, window_bounds = array<i64: 32, 64>}, {pipeline_mode = #tpu.pipeline_mode<synchronous>, transform_indices = @transform_4, window_bounds = array<i64: 1, 64>}, {pipeline_mode = #tpu.pipeline_mode<synchronous>, transform_indices = @transform_5, window_bounds = array<i64: 64, 32>}, {pipeline_mode = #tpu.pipeline_mode<synchronous>, transform_indices = @transform_6, window_bounds = array<i64: 1, 32>}, {pipeline_mode = #tpu.pipeline_mode<synchronous>, transform_indices = @transform_7, window_bounds = array<i64: 1, 32>}, {transform_indices = @transform_8, window_bounds = array<i64: 1, 1>}, {transform_indices = @transform_9, window_bounds = array<i64: 8, 1>}]} {
    %c0 = arith.constant 0 : index
    %c0_0 = arith.constant 0 : index
    %0 = vector.load %arg1[%c0, %c0_0] : memref<8x1xi32, #tpu.memory_space<vmem>>, vector<8x1xi32>
    %c0_1 = arith.constant 0 : index
    %c0_2 = arith.constant 0 : index
    %1 = vector.load %arg2[%c0_1, %c0_2] : memref<8x1xi32, #tpu.memory_space<vmem>>, vector<8x1xi32>
    %c100_i32 = arith.constant 100 : i32
    %2 = vector.broadcast %c100_i32 : i32 to vector<8x1xi32>
    %3 = arith.addi %1, %2 : vector<8x1xi32>
    %4 = tpu.iota {dimensions = array<i32: 1>} : vector<8x300xi32>
    %5 = vector.broadcast %0 : vector<8x1xi32> to vector<8x300xi32>
    %6 = arith.cmpi eq, %4, %5 : vector<8x300xi32>
    %7 = vector.broadcast %3 : vector<8x1xi32> to vector<8x300xi32>
    %8 = arith.cmpi eq, %4, %7 : vector<8x300xi32>
    %9 = arith.ori %6, %8 : vector<8x300xi1>
    %10 = arith.extui %9 : vector<8x300xi1> to vector<8x300xi32>
    %11 = arith.sitofp %10 : vector<8x300xi32> to vector<8x300xf32>
    %c0_3 = arith.constant 0 : index
    %c0_4 = arith.constant 0 : index
    %12 = vector.load %arg3[%c0_3, %c0_4] : memref<300x32xf32, #tpu.memory_space<vmem>>, vector<300x32xf32>
    %cst = arith.constant dense<0.000000e+00> : vector<8x32xf32>
    %13 = tpu.matmul %11, %12, %cst {dimension_numbers = #tpu.dot_dimension_numbers<[1], [0], [0], [1], [0, 0, 1, 1], [], []>} : vector<8x300xf32>, vector<300x32xf32>, vector<8x32xf32> -> vector<8x32xf32>
    %c0_5 = arith.constant 0 : index
    %c0_6 = arith.constant 0 : index
    %14 = vector.load %arg4[%c0_5, %c0_6] : memref<32x64xf32, #tpu.memory_space<vmem>>, vector<32x64xf32>
    %c0_7 = arith.constant 0 : index
    %c0_8 = arith.constant 0 : index
    %15 = vector.load %arg5[%c0_7, %c0_8] : memref<1x64xf32, #tpu.memory_space<vmem>>, vector<1x64xf32>
    %cst_9 = arith.constant dense<0.000000e+00> : vector<8x64xf32>
    %16 = tpu.matmul %13, %14, %cst_9 {dimension_numbers = #tpu.dot_dimension_numbers<[1], [0], [0], [1], [0, 0, 1, 1], [], []>} : vector<8x32xf32>, vector<32x64xf32>, vector<8x64xf32> -> vector<8x64xf32>
    %17 = vector.broadcast %15 : vector<1x64xf32> to vector<8x64xf32>
    %18 = arith.addf %16, %17 : vector<8x64xf32>
    %cst_10 = arith.constant 0.000000e+00 : f32
    %19 = vector.broadcast %cst_10 : f32 to vector<8x64xf32>
    %20 = arith.maximumf %18, %19 : vector<8x64xf32>
    %c0_11 = arith.constant 0 : index
    %c0_12 = arith.constant 0 : index
    %21 = vector.load %arg6[%c0_11, %c0_12] : memref<64x32xf32, #tpu.memory_space<vmem>>, vector<64x32xf32>
    %c0_13 = arith.constant 0 : index
    %c0_14 = arith.constant 0 : index
    %22 = vector.load %arg7[%c0_13, %c0_14] : memref<1x32xf32, #tpu.memory_space<vmem>>, vector<1x32xf32>
    %cst_15 = arith.constant dense<0.000000e+00> : vector<8x32xf32>
    %23 = tpu.matmul %20, %21, %cst_15 {dimension_numbers = #tpu.dot_dimension_numbers<[1], [0], [0], [1], [0, 0, 1, 1], [], []>} : vector<8x64xf32>, vector<64x32xf32>, vector<8x32xf32> -> vector<8x32xf32>
    %24 = vector.broadcast %22 : vector<1x32xf32> to vector<8x32xf32>
    %25 = arith.addf %23, %24 : vector<8x32xf32>
    %cst_16 = arith.constant 0.000000e+00 : f32
    %26 = vector.broadcast %cst_16 : f32 to vector<8x32xf32>
    %27 = arith.maximumf %25, %26 : vector<8x32xf32>
    %c0_17 = arith.constant 0 : index
    %c0_18 = arith.constant 0 : index
    %28 = vector.load %arg8[%c0_17, %c0_18] : memref<1x32xf32, #tpu.memory_space<vmem>>, vector<1x32xf32>
    %c0_19 = arith.constant 0 : index
    %c0_20 = arith.constant 0 : index
    %29 = memref.load %arg9[%c0_19, %c0_20] : memref<1x1xf32, #tpu.memory_space<smem>>
    %30 = vector.broadcast %28 : vector<1x32xf32> to vector<8x32xf32>
    %31 = arith.mulf %27, %30 : vector<8x32xf32>
    %cst_21 = arith.constant dense<0.000000e+00> : vector<8xf32>
    %32 = vector.multi_reduction <add>, %31, %cst_21 [1] : vector<8x32xf32> to vector<8xf32>
    %33 = vector.shape_cast %32 : vector<8xf32> to vector<8x1xf32>
    %34 = vector.broadcast %29 : f32 to vector<8x1xf32>
    %35 = arith.addf %33, %34 : vector<8x1xf32>
    %36 = arith.negf %35 : vector<8x1xf32>
    %37 = math.exp %36 : vector<8x1xf32>
    %cst_22 = arith.constant 1.000000e+00 : f32
    %38 = vector.broadcast %cst_22 : f32 to vector<8x1xf32>
    %39 = arith.addf %38, %37 : vector<8x1xf32>
    %40 = arith.divf %38, %39 : vector<8x1xf32>
    %cst_23 = arith.constant 4.000000e+00 : f32
    %41 = vector.broadcast %cst_23 : f32 to vector<8x1xf32>
    %42 = arith.mulf %40, %41 : vector<8x1xf32>
    %cst_24 = arith.constant 1.000000e+00 : f32
    %43 = vector.broadcast %cst_24 : f32 to vector<8x1xf32>
    %44 = arith.addf %42, %43 : vector<8x1xf32>
    %c0_25 = arith.constant 0 : index
    %c0_26 = arith.constant 0 : index
    %45 = vector.load %arg10[%c0_25, %c0_26] : memref<8x1xf32, #tpu.memory_space<vmem>>, vector<8x1xf32>
    tpu.vector_store %arg10[%c0_25, %c0_26], %44 {strides = array<i32>} : memref<8x1xf32, #tpu.memory_space<vmem>>, vector<8x1xf32>,
    return
  }
  func.func @transform_0(%arg0: i32) -> (i32, i32) {
    %c0_i32 = arith.constant 0 : i32
    %c0_i32_0 = arith.constant 0 : i32
    return %arg0, %c0_i32 : i32, i32
  }
  func.func @transform_1(%arg0: i32) -> (i32, i32) {
    %c0_i32 = arith.constant 0 : i32
    %c0_i32_0 = arith.constant 0 : i32
    return %arg0, %c0_i32 : i32, i32
  }
  func.func @transform_2(%arg0: i32) -> (i32, i32) {
    %c0_i32 = arith.constant 0 : i32
    %c0_i32_0 = arith.constant 0 : i32
    %c0_i32_1 = arith.constant 0 : i32
    return %c0_i32, %c0_i32_0 : i32, i32
  }
  func.func @transform_3(%arg0: i32) -> (i32, i32) {
    %c0_i32 = arith.constant 0 : i32
    %c0_i32_0 = arith.constant 0 : i32
    %c0_i32_1 = arith.constant 0 : i32
    return %c0_i32, %c0_i32_0 : i32, i32
  }
  func.func @transform_4(%arg0: i32) -> (i32, i32) {
    %c0_i32 = arith.constant 0 : i32
    %c0_i32_0 = arith.constant 0 : i32
    %c0_i32_1 = arith.constant 0 : i32
    return %c0_i32, %c0_i32_0 : i32, i32
  }
  func.func @transform_5(%arg0: i32) -> (i32, i32) {
    %c0_i32 = arith.constant 0 : i32
    %c0_i32_0 = arith.constant 0 : i32
    %c0_i32_1 = arith.constant 0 : i32
    return %c0_i32, %c0_i32_0 : i32, i32
  }
  func.func @transform_6(%arg0: i32) -> (i32, i32) {
    %c0_i32 = arith.constant 0 : i32
    %c0_i32_0 = arith.constant 0 : i32
    %c0_i32_1 = arith.constant 0 : i32
    return %c0_i32, %c0_i32_0 : i32, i32
  }
  func.func @transform_7(%arg0: i32) -> (i32, i32) {
    %c0_i32 = arith.constant 0 : i32
    %c0_i32_0 = arith.constant 0 : i32
    %c0_i32_1 = arith.constant 0 : i32
    return %c0_i32, %c0_i32_0 : i32, i32
  }
  func.func @transform_8(%arg0: i32) -> (i32, i32) {
    %c0_i32 = arith.constant 0 : i32
    %c0_i32_0 = arith.constant 0 : i32
    %c0_i32_1 = arith.constant 0 : i32
    return %c0_i32, %c0_i32_0 : i32, i32
  }
  func.func @transform_9(%arg0: i32) -> (i32, i32) {
    %c0_i32 = arith.constant 0 : i32
    %c0_i32_0 = arith.constant 0 : i32
    return %arg0, %c0_i32 : i32, i32
  }
}

</mosaic_0001>

<llo_original>
// kernel: concat_net_forward.1
$region0: #{concat_net_forward.1}
  #allocation0 [shape = 'u32[]', space=smem, size = 0x4, offset = 0x4, fixed_abs, tag = 'smem constant byte address 0x4 - core index']
  #allocation1 [shape = 'u32[144,128]{1,0:T(1,128)}', space=vmem, size = 0x12000, scoped, tag = 'internal scratch']
  #allocation2 [shape = 'f32[1,1]{1,0:T(1,128)S(6)}', space=smem, size = 0x200, scoped, tag = 'scoped memory for concat_net_forward.1']
  %s0 = inlined_call_operand.vmem [shape: s32[8,1], index: 0, kind: input, shape index: {}]
  %s1 = inlined_call_operand.vmem [shape: s32[8,1], index: 1, kind: input, shape index: {}]
  %s2 = inlined_call_operand.vmem [shape: f32[300,32], index: 2, kind: input, shape index: {}]
  %s3 = inlined_call_operand.vmem [shape: f32[32,64], index: 3, kind: input, shape index: {}]
  %s4 = inlined_call_operand.vmem [shape: f32[1,64], index: 4, kind: input, shape index: {}]
  %s5 = inlined_call_operand.vmem [shape: f32[64,32], index: 5, kind: input, shape index: {}]
  %s6 = inlined_call_operand.vmem [shape: f32[1,32], index: 6, kind: input, shape index: {}]
  %s7 = inlined_call_operand.vmem [shape: f32[1,32], index: 7, kind: input, shape index: {}]
  %s8 = inlined_call_operand.<no memory space> [shape: f32[1,1], index: 8, kind: input, shape index: {}]
  %s9 = inlined_call_operand.vmem [shape: f32[8,1], index: 9, kind: output, shape index: {}]
  %s10 = sld [smem:[#allocation0]]
  $region46: #{concat_net_forward.1} parent=0
    _
  %s12 = ssub.s32 1, %s10
  %s13 = scalar_select 0, %s12, %s10
  %14 = sst [smem:[#allocation2]] %s8
  // Predicated region
  $region2: #{concat_net_forward.1} parent=0 // pred_check
    _
  $region3: #{concat_net_forward.1} parent=0 // pred_check_branch
    %16 = sbr.rel (0) target = $region5
  $region4: #{concat_net_forward.1} parent=0 // pred_region
    _
  $region5: #{concat_net_forward.1} parent=0 // pred_fallthru
    _
  // Predicated region
  $region6: #{concat_net_forward.1} parent=0 // pred_check
    _
  $region7: #{concat_net_forward.1} parent=0 // pred_check_branch
    %18 = sbr.rel (0) target = $region9
  $region8: #{concat_net_forward.1} parent=0 // pred_region
    _
  $region9: #{concat_net_forward.1} parent=0 // pred_fallthru
    _
  // Predicated region
  $region10: #{concat_net_forward.1} parent=0 // pred_check
    _
  $region11: #{concat_net_forward.1} parent=0 // pred_check_branch
    %20 = sbr.rel (0) target = $region13
  $region12: #{concat_net_forward.1} parent=0 // pred_region
    _
  $region13: #{concat_net_forward.1} parent=0 // pred_fallthru
    _
  // Predicated region
  $region14: #{concat_net_forward.1} parent=0 // pred_check
    _
  $region15: #{concat_net_forward.1} parent=0 // pred_check_branch
    %22 = sbr.rel (0) target = $region17
  $region16: #{concat_net_forward.1} parent=0 // pred_region
    _
  $region17: #{concat_net_forward.1} parent=0 // pred_fallthru
    _
  // Predicated region
  $region18: #{concat_net_forward.1} parent=0 // pred_check
    _
  $region19: #{concat_net_forward.1} parent=0 // pred_check_branch
    %24 = sbr.rel (0) target = $region21
  $region20: #{concat_net_forward.1} parent=0 // pred_region
    _
  $region21: #{concat_net_forward.1} parent=0 // pred_fallthru
    _
  // Predicated region
  $region22: #{concat_net_forward.1} parent=0 // pred_check
    _
  $region23: #{concat_net_forward.1} parent=0 // pred_check_branch
    %26 = sbr.rel (0) target = $region25
  $region24: #{concat_net_forward.1} parent=0 // pred_region
    _
  $region25: #{concat_net_forward.1} parent=0 // pred_fallthru
    _
  // Predicated region
  $region26: #{concat_net_forward.1} parent=0 // pred_check
    _
  $region27: #{concat_net_forward.1} parent=0 // pred_check_branch
    %28 = sbr.rel (0) target = $region29
  $region28: #{concat_net_forward.1} parent=0 // pred_region
    _
  $region29: #{concat_net_forward.1} parent=0 // pred_fallthru
    _
  // Predicated region
  $region30: #{concat_net_forward.1} parent=0 // pred_check
    _
  $region31: #{concat_net_forward.1} parent=0 // pred_check_branch
    %30 = sbr.rel (0) target = $region33
  $region32: #{concat_net_forward.1} parent=0 // pred_region
    _
  $region33: #{concat_net_forward.1} parent=0 // pred_fallthru
    _
  // Predicated region
  $region34: #{concat_net_forward.1} parent=0 // pred_check
    _
  $region35: #{concat_net_forward.1} parent=0 // pred_check_branch
    %32 = sbr.rel (0) target = $region37
  $region36: #{concat_net_forward.1} parent=0 // pred_region
    _
  $region37: #{concat_net_forward.1} parent=0 // pred_fallthru
    _
  %v33 = vld [vmem:[%s0] sm:$0xff]
  %v34 = vld [vmem:[%s1] sm:$0xff]
  %v35 = vadd.s32 %v34, 100
  %v36 = vlaneseq
  %v37 = vand.u32 %v36, 127
  %v38 = vadd.s32 %v37, 128
  %v39 = vadd.s32 %v37, 256
  %40 = vset.pattern.permute.xlu0 0
  %41 = vperm.xlu0 %40, %v33
  %v42 = vpop.permute.xlu0 %41
  %vm43 = vcmp.eq.s32.totalorder %v37, %v42
  %vm44 = vcmp.eq.s32.totalorder %v38, %v42
  %vm45 = vcmp.eq.s32.totalorder %v39, %v42
  %46 = vset.pattern.permute.xlu0 0
  %47 = vperm.xlu0 %46, %v35
  %v48 = vpop.permute.xlu0 %47
  %vm49 = vcmp.eq.s32.totalorder %v37, %v48
  %vm50 = vcmp.eq.s32.totalorder %v38, %v48
  %vm51 = vcmp.eq.s32.totalorder %v39, %v48
  %vm52 = vmor %vm43, %vm49
  %vm53 = vmor %vm44, %vm50
  %vm54 = vmor %vm45, %vm51
  %v55 = vsel %vm52, 1, 0
  %v56 = vsel %vm53, 1, 0
  %v57 = vsel %vm54, 1, 0
  %v58 = vcvt.s32.f32 %v55
  %v59 = vcvt.s32.f32 %v56
  %v60 = vcvt.s32.f32 %v57
  %v61 = vld [vmem:[%s2] sm:$0xff]
  %v62 = vld [vmem:[%s2 + $0x8] sm:$0xff]
  %v63 = vld [vmem:[%s2 + $0x10] sm:$0xff]
  %v64 = vld [vmem:[%s2 + $0x18] sm:$0xff]
  %v65 = vld [vmem:[%s2 + $0x20] sm:$0xff]
  %v66 = vld [vmem:[%s2 + $0x28] sm:$0xff]
  %v67 = vld [vmem:[%s2 + $0x30] sm:$0xff]
  %v68 = vld [vmem:[%s2 + $0x38] sm:$0xff]
  %v69 = vld [vmem:[%s2 + $0x40] sm:$0xff]
  %v70 = vld [vmem:[%s2 + $0x48] sm:$0xff]
  %v71 = vld [vmem:[%s2 + $0x50] sm:$0xff]
  %v72 = vld [vmem:[%s2 + $0x58] sm:$0xff]
  %v73 = vld [vmem:[%s2 + $0x60] sm:$0xff]
  %v74 = vld [vmem:[%s2 + $0x68] sm:$0xff]
  %v75 = vld [vmem:[%s2 + $0x70] sm:$0xff]
  %v76 = vld [vmem:[%s2 + $0x78] sm:$0xff]
  %v77 = vld [vmem:[%s2 + $0x80] sm:$0xff]
  %v78 = vld [vmem:[%s2 + $0x88] sm:$0xff]
  %v79 = vld [vmem:[%s2 + $0x90] sm:$0xff]
  %v80 = vld [vmem:[%s2 + $0x98] sm:$0xff]
  %v81 = vld [vmem:[%s2 + $0xa0] sm:$0xff]
  %v82 = vld [vmem:[%s2 + $0xa8] sm:$0xff]
  %v83 = vld [vmem:[%s2 + $0xb0] sm:$0xff]
  %v84 = vld [vmem:[%s2 + $0xb8] sm:$0xff]
  %v85 = vld [vmem:[%s2 + $0xc0] sm:$0xff]
  %v86 = vld [vmem:[%s2 + $0xc8] sm:$0xff]
  %v87 = vld [vmem:[%s2 + $0xd0] sm:$0xff]
  %v88 = vld [vmem:[%s2 + $0xd8] sm:$0xff]
  %v89 = vld [vmem:[%s2 + $0xe0] sm:$0xff]
  %v90 = vld [vmem:[%s2 + $0xe8] sm:$0xff]
  %v91 = vld [vmem:[%s2 + $0xf0] sm:$0xff]
  %v92 = vld [vmem:[%s2 + $0xf8] sm:$0xff]
  %v93 = vld [vmem:[%s2 + $0x100] sm:$0xff]
  %v94 = vld [vmem:[%s2 + $0x108] sm:$0xff]
  %v95 = vld [vmem:[%s2 + $0x110] sm:$0xff]
  %v96 = vld [vmem:[%s2 + $0x118] sm:$0xff]
  %v97 = vld [vmem:[%s2 + $0x120] sm:$0xff]
  %v98 = vld [vmem:[%s2 + $0x128] sm:$0xf]
  %vm99 = vcmask 359424
  %v101 = vsel %vm99, %v60, 0
  %vm103 = vcmask 1043456
  %v105 = vsel %vm103, %v98, 0
  %107 = vmatprep.subr.mxu0 0.0
  %108 = vmatpush1.msra.mxu0 %v61
  %109 = vmatprep.subr.mxu0 0.0
  %110 = vmatpush1.msra.mxu0 %v62
  %111 = vmatprep.subr.mxu0 0.0
  %112 = vmatpush1.msra.mxu0 %v63
  %113 = vmatprep.subr.mxu0 0.0
  %114 = vmatpush1.msra.mxu0 %v64
  %115 = vmatprep.subr.mxu0 0.0
  %116 = vmatpush1.msra.mxu0 %v65
  %117 = vmatprep.subr.mxu0 0.0
  %118 = vmatpush1.msra.mxu0 %v66
  %119 = vmatprep.subr.mxu0 0.0
  %120 = vmatpush1.msra.mxu0 %v67
  %121 = vmatprep.subr.mxu0 0.0
  %122 = vmatpush1.msra.mxu0 %v68
  %123 = vmatprep.subr.mxu0 0.0
  %124 = vmatpush1.msra.mxu0 %v69
  %125 = vmatprep.subr.mxu0 0.0
  %126 = vmatpush1.msra.mxu0 %v70
  %127 = vmatprep.subr.mxu0 0.0
  %128 = vmatpush1.msra.mxu0 %v71
  %129 = vmatprep.subr.mxu0 0.0
  %130 = vmatpush1.msra.mxu0 %v72
  %131 = vmatprep.subr.mxu0 0.0
  %132 = vmatpush1.msra.mxu0 %v73
  %133 = vmatprep.subr.mxu0 0.0
  %134 = vmatpush1.msra.mxu0 %v74
  %135 = vmatprep.subr.mxu0 0.0
  %136 = vmatpush1.msra.mxu0 %v75
  %137 = vmatprep.subr.mxu0 0.0
  %138 = vmatpush1.msra.mxu0 %v76
  %139 = vmatprep.subr.mxu0 0.0
  %140 = vmatpush1.msra.mxu0 %v77
  %141 = vmatprep.subr.mxu0 0.0
  %142 = vmatpush1.msra.mxu0 %v78
  %143 = vmatprep.subr.mxu0 0.0
  %144 = vmatpush1.msra.mxu0 %v79
  %145 = vmatprep.subr.mxu0 0.0
  %146 = vmatpush1.msra.mxu0 %v80
  %147 = vmatprep.subr.mxu0 0.0
  %148 = vmatpush1.msra.mxu0 %v81
  %149 = vmatprep.subr.mxu0 0.0
  %150 = vmatpush1.msra.mxu0 %v82
  %151 = vmatprep.subr.mxu0 0.0
  %152 = vmatpush1.msra.mxu0 %v83
  %153 = vmatprep.subr.mxu0 0.0
  %154 = vmatpush1.msra.mxu0 %v84
  %155 = vmatprep.subr.mxu0 0.0
  %156 = vmatpush1.msra.mxu0 %v85
  %157 = vmatprep.subr.mxu0 0.0
  %158 = vmatpush1.msra.mxu0 %v86
  %159 = vmatprep.subr.mxu0 0.0
  %160 = vmatpush1.msra.mxu0 %v87
  %161 = vmatprep.subr.mxu0 0.0
  %162 = vmatpush1.msra.mxu0 %v88
  %163 = vmatprep.subr.mxu0 0.0
  %164 = vmatpush1.msra.mxu0 %v89
  %165 = vmatprep.subr.mxu0 0.0
  %166 = vmatpush1.msra.mxu0 %v90
  %167 = vmatprep.subr.mxu0 0.0
  %168 = vmatpush1.msra.mxu0 %v91
  %169 = vmatprep.subr.mxu0 0.0
  %170 = vmatpush1.msra.mxu0 %v92
  %171 = vmatprep.mubr.f32.mxu0 %v59
  %172 = vmatmul.mubr.f32.gmra.mrb[0].mxu0 %v58
  %v173 = vpop.f32.mrb[0].mxu0
  %v174 = vadd.f32 0.0, %v173
  %v175 = vpop.f32.mrb[0].mxu0
  %176 = vdwg.mxu0
  %177 = vmatprep.subr.mxu0 0.0
  %178 = vmatpush1.msra.mxu0 %v93
  %179 = vmatprep.subr.mxu0 0.0
  %180 = vmatpush1.msra.mxu0 %v94
  %181 = vmatprep.subr.mxu0 0.0
  %182 = vmatpush1.msra.mxu0 %v95
  %183 = vmatprep.subr.mxu0 0.0
  %184 = vmatpush1.msra.mxu0 %v96
  %185 = vmatprep.subr.mxu0 0.0
  %186 = vmatpush1.msra.mxu0 %v97
  %187 = vmatprep.subr.mxu0 0.0
  %188 = vmatpush1.msra.mxu0 %v105
  %189 = vmatprep.subr.mxu0 0.0
  %190 = vmatpush1.msra.mxu0 0.0
  %191 = vmatprep.subr.mxu0 0.0
  %192 = vmatpush1.msra.mxu0 0.0
  %193 = vmatprep.subr.mxu0 0.0
  %194 = vmatpush1.msra.mxu0 0.0
  %195 = vmatprep.subr.mxu0 0.0
  %196 = vmatpush1.msra.mxu0 0.0
  %197 = vmatprep.subr.mxu0 0.0
  %198 = vmatpush1.msra.mxu0 0.0
  %199 = vmatprep.subr.mxu0 0.0
  %200 = vmatpush1.msra.mxu0 0.0
  %201 = vmatprep.subr.mxu0 0.0
  %202 = vmatpush1.msra.mxu0 0.0
  %203 = vmatprep.subr.mxu0 0.0
  %204 = vmatpush1.msra.mxu0 0.0
  %205 = vmatprep.subr.mxu0 0.0
  %206 = vmatpush1.msra.mxu0 0.0
  %207 = vmatprep.subr.mxu0 0.0
  %208 = vmatpush1.msra.mxu0 0.0
  %209 = vmatprep.subr.mxu0 0.0
  %210 = vmatpush1.msra.mxu0 0.0
  %211 = vmatprep.subr.mxu0 0.0
  %212 = vmatpush1.msra.mxu0 0.0
  %213 = vmatprep.subr.mxu0 0.0
  %214 = vmatpush1.msra.mxu0 0.0
  %215 = vmatprep.subr.mxu0 0.0
  %216 = vmatpush1.msra.mxu0 0.0
  %217 = vmatprep.subr.mxu0 0.0
  %218 = vmatpush1.msra.mxu0 0.0
  %219 = vmatprep.subr.mxu0 0.0
  %220 = vmatpush1.msra.mxu0 0.0
  %221 = vmatprep.subr.mxu0 0.0
  %222 = vmatpush1.msra.mxu0 0.0
  %223 = vmatprep.subr.mxu0 0.0
  %224 = vmatpush1.msra.mxu0 0.0
  %225 = vmatprep.subr.mxu0 0.0
  %226 = vmatpush1.msra.mxu0 0.0
  %227 = vmatprep.subr.mxu0 0.0
  %228 = vmatpush1.msra.mxu0 0.0
  %229 = vmatprep.subr.mxu0 0.0
  %230 = vmatpush1.msra.mxu0 0.0
  %231 = vmatprep.subr.mxu0 0.0
  %232 = vmatpush1.msra.mxu0 0.0
  %233 = vmatprep.subr.mxu0 0.0
  %234 = vmatpush1.msra.mxu0 0.0
  %235 = vmatprep.subr.mxu0 0.0
  %236 = vmatpush1.msra.mxu0 0.0
  %237 = vmatprep.subr.mxu0 0.0
  %238 = vmatpush1.msra.mxu0 0.0
  %239 = vmatprep.subr.mxu0 0.0
  %240 = vmatpush1.msra.mxu0 0.0
  %241 = vmatprep.mubr.f32.mxu0 0.0
  %242 = vmatmul.mubr.f32.gmra.mrb[0].mxu0 %v101
  %v243 = vpop.f32.mrb[0].mxu0
  %v244 = vadd.f32 %v174, %v243
  %v245 = vpop.f32.mrb[0].mxu0
  %246 = vdwg.mxu0
  %v247 = vld [vmem:[%s3] sm:$0xff]
  %v248 = vld [vmem:[%s3 + $0x8] sm:$0xff]
  %v249 = vld [vmem:[%s3 + $0x10] sm:$0xff]
  %v250 = vld [vmem:[%s3 + $0x18] sm:$0xff]
  %v251 = vld [vmem:[%s4] sm:$0x1]
  %v253 = vlaneseq
  %v254 = vshrl.u32 %v253, 7
  %v255 = vsub.s32 0, %v254
  %v256 = vrot.slane %v251, %v255
  %vm258 = vcmask 261120
  %v260 = vsel %vm258, %v244, 0
  %262 = vmatprep.subr.mxu0 0.0
  %263 = vmatpush1.msra.mxu0 %v247
  %264 = vmatprep.subr.mxu0 0.0
  %265 = vmatpush1.msra.mxu0 %v248
  %266 = vmatprep.subr.mxu0 0.0
  %267 = vmatpush1.msra.mxu0 %v249
  %268 = vmatprep.subr.mxu0 0.0
  %269 = vmatpush1.msra.mxu0 %v250
  %270 = vmatprep.subr.mxu0 0.0
  %271 = vmatpush1.msra.mxu0 0.0
  %272 = vmatprep.subr.mxu0 0.0
  %273 = vmatpush1.msra.mxu0 0.0
  %274 = vmatprep.subr.mxu0 0.0
  %275 = vmatpush1.msra.mxu0 0.0
  %276 = vmatprep.subr.mxu0 0.0
  %277 = vmatpush1.msra.mxu0 0.0
  %278 = vmatprep.subr.mxu0 0.0
  %279 = vmatpush1.msra.mxu0 0.0
  %280 = vmatprep.subr.mxu0 0.0
  %281 = vmatpush1.msra.mxu0 0.0
  %282 = vmatprep.subr.mxu0 0.0
  %283 = vmatpush1.msra.mxu0 0.0
  %284 = vmatprep.subr.mxu0 0.0
  %285 = vmatpush1.msra.mxu0 0.0
  %286 = vmatprep.subr.mxu0 0.0
  %287 = vmatpush1.msra.mxu0 0.0
  %288 = vmatprep.subr.mxu0 0.0
  %289 = vmatpush1.msra.mxu0 0.0
  %290 = vmatprep.subr.mxu0 0.0
  %291 = vmatpush1.msra.mxu0 0.0
  %292 = vmatprep.subr.mxu0 0.0
  %293 = vmatpush1.msra.mxu0 0.0
  %294 = vmatprep.subr.mxu0 0.0
  %295 = vmatpush1.msra.mxu0 0.0
  %296 = vmatprep.subr.mxu0 0.0
  %297 = vmatpush1.msra.mxu0 0.0
  %298 = vmatprep.subr.mxu0 0.0
  %299 = vmatpush1.msra.mxu0 0.0
  %300 = vmatprep.subr.mxu0 0.0
  %301 = vmatpush1.msra.mxu0 0.0
  %302 = vmatprep.subr.mxu0 0.0
  %303 = vmatpush1.msra.mxu0 0.0
  %304 = vmatprep.subr.mxu0 0.0
  %305 = vmatpush1.msra.mxu0 0.0
  %306 = vmatprep.subr.mxu0 0.0
  %307 = vmatpush1.msra.mxu0 0.0
  %308 = vmatprep.subr.mxu0 0.0
  %309 = vmatpush1.msra.mxu0 0.0
  %310 = vmatprep.subr.mxu0 0.0
  %311 = vmatpush1.msra.mxu0 0.0
  %312 = vmatprep.subr.mxu0 0.0
  %313 = vmatpush1.msra.mxu0 0.0
  %314 = vmatprep.subr.mxu0 0.0
  %315 = vmatpush1.msra.mxu0 0.0
  %316 = vmatprep.subr.mxu0 0.0
  %317 = vmatpush1.msra.mxu0 0.0
  %318 = vmatprep.subr.mxu0 0.0
  %319 = vmatpush1.msra.mxu0 0.0
  %320 = vmatprep.subr.mxu0 0.0
  %321 = vmatpush1.msra.mxu0 0.0
  %322 = vmatprep.subr.mxu0 0.0
  %323 = vmatpush1.msra.mxu0 0.0
  %324 = vmatprep.subr.mxu0 0.0
  %325 = vmatpush1.msra.mxu0 0.0
  %326 = vmatprep.mubr.f32.mxu0 0.0
  %327 = vmatmul.mubr.f32.gmra.mrb[0].mxu0 %v260
  %v328 = vpop.f32.mrb[0].mxu0
  %v329 = vadd.f32 %v256, %v328
  %v330 = vpop.f32.mrb[0].mxu0
  %331 = vdwg.mxu0
  %v332 = vmax.f32 %v329, 0.0
  %v333 = vld [vmem:[%s5] sm:$0xff]
  %v334 = vld [vmem:[%s5 + $0x8] sm:$0xff]
  %v335 = vld [vmem:[%s5 + $0x10] sm:$0xff]
  %v336 = vld [vmem:[%s5 + $0x18] sm:$0xff]
  %v337 = vld [vmem:[%s5 + $0x20] sm:$0xff]
  %v338 = vld [vmem:[%s5 + $0x28] sm:$0xff]
  %v339 = vld [vmem:[%s5 + $0x30] sm:$0xff]
  %v340 = vld [vmem:[%s5 + $0x38] sm:$0xff]
  %v341 = vld [vmem:[%s6] sm:$0x1]
  %v343 = vlaneseq
  %v344 = vshrl.u32 %v343, 7
  %v345 = vsub.s32 0, %v344
  %v346 = vrot.slane %v341, %v345
  %vm348 = vcmask 523264
  %v350 = vsel %vm348, %v332, 0
  %352 = vmatprep.subr.mxu0 0.0
  %353 = vmatpush1.msra.mxu0 %v333
  %354 = vmatprep.subr.mxu0 0.0
  %355 = vmatpush1.msra.mxu0 %v334
  %356 = vmatprep.subr.mxu0 0.0
  %357 = vmatpush1.msra.mxu0 %v335
  %358 = vmatprep.subr.mxu0 0.0
  %359 = vmatpush1.msra.mxu0 %v336
  %360 = vmatprep.subr.mxu0 0.0
  %361 = vmatpush1.msra.mxu0 %v337
  %362 = vmatprep.subr.mxu0 0.0
  %363 = vmatpush1.msra.mxu0 %v338
  %364 = vmatprep.subr.mxu0 0.0
  %365 = vmatpush1.msra.mxu0 %v339
  %366 = vmatprep.subr.mxu0 0.0
  %367 = vmatpush1.msra.mxu0 %v340
  %368 = vmatprep.subr.mxu0 0.0
  %369 = vmatpush1.msra.mxu0 0.0
  %370 = vmatprep.subr.mxu0 0.0
  %371 = vmatpush1.msra.mxu0 0.0
  %372 = vmatprep.subr.mxu0 0.0
  %373 = vmatpush1.msra.mxu0 0.0
  %374 = vmatprep.subr.mxu0 0.0
  %375 = vmatpush1.msra.mxu0 0.0
  %376 = vmatprep.subr.mxu0 0.0
  %377 = vmatpush1.msra.mxu0 0.0
  %378 = vmatprep.subr.mxu0 0.0
  %379 = vmatpush1.msra.mxu0 0.0
  %380 = vmatprep.subr.mxu0 0.0
  %381 = vmatpush1.msra.mxu0 0.0
  %382 = vmatprep.subr.mxu0 0.0
  %383 = vmatpush1.msra.mxu0 0.0
  %384 = vmatprep.subr.mxu0 0.0
  %385 = vmatpush1.msra.mxu0 0.0
  %386 = vmatprep.subr.mxu0 0.0
  %387 = vmatpush1.msra.mxu0 0.0
  %388 = vmatprep.subr.mxu0 0.0
  %389 = vmatpush1.msra.mxu0 0.0
  %390 = vmatprep.subr.mxu0 0.0
  %391 = vmatpush1.msra.mxu0 0.0
  %392 = vmatprep.subr.mxu0 0.0
  %393 = vmatpush1.msra.mxu0 0.0
  %394 = vmatprep.subr.mxu0 0.0
  %395 = vmatpush1.msra.mxu0 0.0
  %396 = vmatprep.subr.mxu0 0.0
  %397 = vmatpush1.msra.mxu0 0.0
  %398 = vmatprep.subr.mxu0 0.0
  %399 = vmatpush1.msra.mxu0 0.0
  %400 = vmatprep.subr.mxu0 0.0
  %401 = vmatpush1.msra.mxu0 0.0
  %402 = vmatprep.subr.mxu0 0.0
  %403 = vmatpush1.msra.mxu0 0.0
  %404 = vmatprep.subr.mxu0 0.0
  %405 = vmatpush1.msra.mxu0 0.0
  %406 = vmatprep.subr.mxu0 0.0
  %407 = vmatpush1.msra.mxu0 0.0
  %408 = vmatprep.subr.mxu0 0.0
  %409 = vmatpush1.msra.mxu0 0.0
  %410 = vmatprep.subr.mxu0 0.0
  %411 = vmatpush1.msra.mxu0 0.0
  %412 = vmatprep.subr.mxu0 0.0
  %413 = vmatpush1.msra.mxu0 0.0
  %414 = vmatprep.subr.mxu0 0.0
  %415 = vmatpush1.msra.mxu0 0.0
  %416 = vmatprep.mubr.f32.mxu0 0.0
  %417 = vmatmul.mubr.f32.gmra.mrb[0].mxu0 %v350
  %v418 = vpop.f32.mrb[0].mxu0
  %v419 = vadd.f32 %v346, %v418
  %v420 = vpop.f32.mrb[0].mxu0
  %421 = vdwg.mxu0
  %v422 = vmax.f32 %v419, 0.0
  %v423 = vld [vmem:[%s7] sm:$0x1]
  %s424 = sld [smem:[#allocation2]]
  %v426 = vlaneseq
  %v427 = vshrl.u32 %v426, 7
  %v428 = vsub.s32 0, %v427
  %v429 = vrot.slane %v423, %v428
  %v431 = vmul.f32 %v422, %v429
  %v432 = vsel %vm258, %v431, 0.0
  %433 = vadd.xlane.f32.xlu0 %v432
  %v434 = vpop.xlane.xlu0 %433
  %v435 = vstv %s424
  %v436 = vadd.f32 %v434, %v435
  %v437 = vxor.u32 %v436, 2147483648
  %v438 = vmul.f32 %v437, 1.442695
  %v439 = vpow.pop %v438
  %v440 = vadd.f32 %v439, 1.0
  %v441 = vrcp.pop %v440
  %v442 = vmul.f32 1.0, %v441
  %v443 = vmul.f32 %v442, 4.0
  %v444 = vadd.f32 %v443, 1.0
  %vm445 = vcmask 7168
  %446 = vst.msk [vmem:[%s9] sm:$0xff] %vm445, %v444
  // Predicated region
  $region38: #{concat_net_forward.1} parent=0 // pred_check
    _
  $region39: #{concat_net_forward.1} parent=0 // pred_check_branch
    %448 = sbr.rel (0) target = $region41
  $region40: #{concat_net_forward.1} parent=0 // pred_region
    _
  $region41: #{concat_net_forward.1} parent=0 // pred_fallthru
    _
  // Predicated region
  $region42: #{concat_net_forward.1} parent=0 // pred_check
    _
  $region43: #{concat_net_forward.1} parent=0 // pred_check_branch
    %450 = sbr.rel (0) target = $region45
  $region44: #{concat_net_forward.1} parent=0 // pred_region
    _
  $region45: #{concat_net_forward.1} parent=0 // pred_fallthru
    _

</llo_original>
